<compile_context>
chip_gen: v7x
topology: tpu7x:2x2x1
jax: 0.10.0
libtpu: 0.0.40
codegen_flags: <defaults>
</compile_context>

<pallas_src>
import functools

import numpy as np
import jax
import jax.numpy as jnp
from jax.experimental import pallas as pl
from jax.experimental.pallas import tpu as pltpu


def _cb_loss_kernel(logits_ref, labels_ref, alpha_ref, out_ref, *,
                    gamma, batch, needs_mask):
    x = logits_ref[...].astype(jnp.float32)        # [TB, C]
    lab = labels_ref[...]                          # [TB, 1] int32
    alpha = alpha_ref[...]                         # [TB, 1] float32
    TB, C = x.shape

    # one-hot position via iota compare (no float one-hot materialized)
    cls_ids = jax.lax.broadcasted_iota(jnp.int32, (TB, C), 1)
    is_label = cls_ids == lab                      # [TB, C] bool

    relu_x = jnp.maximum(x, 0.0)
    e = jnp.exp(-jnp.abs(x))                       # exp(-|x|), shared
    sp = jnp.log1p(e)                              # log(1 + exp(-|x|)), shared
    lab_x = jnp.where(is_label, x, 0.0)            # x on the label column, else 0

    # stable binary_cross_entropy_with_logits(x, one_hot), reduction='none'
    bce = relu_x - lab_x + sp

    if gamma == 0.0:
        per_elem = bce
    elif gamma == 2.0:
        # modulator = (1-p)^2 on the label column, p^2 elsewhere, p = sigmoid(x).
        # s = sigmoid(|x|) = 1/(1+e); sigmoid(-|x|) = e*s.  Avoids a second exp
        # and the catastrophic 1-p subtraction.
        s = pl.reciprocal(1.0 + e, approx=True)
        pos = x >= 0.0
        p_t = jnp.where(is_label == pos, e * s, s)
        per_elem = (p_t * p_t) * bce
    else:
        # generic path: exp(-gamma*(y*x + log(1+exp(-x)))), stable softplus(-x)
        softplus_neg_x = relu_x - x + sp
        per_elem = jnp.exp(-gamma * (lab_x + softplus_neg_x)) * bce

    # alpha is per-row: factor it out of the lane reduction
    row_loss = jnp.sum(per_elem, axis=1, keepdims=True)      # [TB, 1]
    contrib = alpha * row_loss                                # [TB, 1]

    if needs_mask:
        # only emitted when B % TB != 0: mask padded rows of the last tile
        # at the reduced [TB,1] level (garbage/NaN never propagates through
        # the where-select).
        row_ids = jax.lax.broadcasted_iota(jnp.int32, (TB, 1), 0) \
            + pl.program_id(0) * TB
        contrib = jnp.where(row_ids < batch, contrib, 0.0)

    partial = jnp.sum(contrib, axis=0, keepdims=True)         # (1, 1)
    out_ref[...] = jnp.broadcast_to(partial.reshape(1, 1, 1), out_ref.shape)


def _pick_vmem_limit_bytes():
    """Generation-aware scoped-VMEM ceiling, leaving headroom below physical."""
    phys = 64 << 20                       # conservative fallback (v7x per-TC)
    try:
        info = pltpu.get_tpu_info()
        for attr in ("vmem_capacity_bytes", "vmem_bytes", "vmem_size_bytes"):
            v = getattr(info, attr, None)
            if v:
                phys = int(v)
                break
    except Exception:
        pass
    # v5e/v6e (128 MiB) -> 96 MiB; v7x (64 MiB) -> 48 MiB
    return max(32 << 20, min(phys - (16 << 20), 96 << 20))


def _round_tile(tb, batch, mult):
    tb = max(mult, (int(tb) // mult) * mult)
    return batch if tb >= batch else tb


def _pick_batch_tile(batch, num_classes, itemsize, vmem_limit_bytes, mult):
    """Largest sublane-multiple batch tile whose double-buffered VMEM footprint
    fits in ~60% of the scoped-VMEM budget (no arbitrary row cap)."""
    lanes_c = ((num_classes + 127) // 128) * 128      # lane-padded class dim
    # per-row VMEM bytes, double-buffered:
    #   logits:            2 * lane-padded C * itemsize
    #   labels + alpha:    (TB,1) blocks pad to 128 lanes of 4B each
    per_row = 2 * lanes_c * itemsize + 2 * 2 * 128 * 4
    budget = (vmem_limit_bytes * 3) // 5
    return _round_tile(budget // per_row, batch, mult)


def cb_loss(logits, labels, samples_per_cls, no_of_classes,
            beta=0.999, gamma=2.0, block_batch=None):
    """Class-balanced focal loss. logits: [B, C] float, labels: [B] int in [0, C)."""
    # per-class weights from samples_per_cls (numpy math, as in the reference)
    effective_num = 1.0 - np.power(beta, np.asarray(samples_per_cls, dtype=np.float64))
    weights = (1.0 - beta) / effective_num
    weights = weights / np.sum(weights) * no_of_classes
    weights = jnp.asarray(weights, dtype=jnp.float32)          # [C]

    logits = jnp.asarray(logits)                # keep input dtype on the wire
    B, C = logits.shape
    labels = jnp.asarray(labels, dtype=jnp.int32)
    labels2d = labels.reshape(B, 1)
    # per-example class-balanced weight = weights[label]  (assumes valid labels)
    alpha = jnp.take(weights, labels).astype(jnp.float32).reshape(B, 1)

    itemsize = jnp.dtype(logits.dtype).itemsize
    mult = max(8, 32 // itemsize)               # 8 f32, 16 bf16, 32 int8
    vmem_limit = _pick_vmem_limit_bytes()
    if block_batch is not None:
        TB = _round_tile(block_batch, B, mult)
    else:
        TB = _pick_batch_tile(B, C, itemsize, vmem_limit, mult)

    G = pl.cdiv(B, TB)
    needs_mask = (B % TB) != 0

    kernel = functools.partial(_cb_loss_kernel, gamma=float(gamma),
                               batch=B, needs_mask=needs_mask)
    partials = pl.pallas_call(
        kernel,
        out_shape=jax.ShapeDtypeStruct((G, 8, 128), jnp.float32),
        grid_spec=pltpu.PrefetchScalarGridSpec(
            num_scalar_prefetch=0,
            grid=(G,),
            in_specs=[
                pl.BlockSpec((TB, C), lambda i: (i, 0)),   # logits tile
                pl.BlockSpec((TB, 1), lambda i: (i, 0)),   # labels tile
                pl.BlockSpec((TB, 1), lambda i: (i, 0)),   # alpha tile
            ],
            # per-tile partial numerator; (8,128) block keeps stores lane-dense
            # and within native tiling; wrapper reads [:, 0, 0].
            out_specs=pl.BlockSpec((1, 8, 128), lambda i: (i, 0, 0)),
        ),
        compiler_params=pltpu.CompilerParams(
            dimension_semantics=("parallel",),   # independent tiles -> megacore
            vmem_limit_bytes=int(vmem_limit),
        ),
    )(logits, labels2d, alpha)

    # denominator = sum(one_hot(labels)) == B  (labels assumed in [0, C),
    # exactly as F.one_hot in the PyTorch module requires)
    return jnp.sum(partials[:, 0, 0]) / jnp.float32(B)


def _reference_cb_loss(logits, labels, samples_per_cls, no_of_classes, beta, gamma):
    # pure-JAX reference mirroring the PyTorch module, for sanity check
    effective_num = 1.0 - np.power(beta, np.asarray(samples_per_cls, dtype=np.float64))
    w = (1.0 - beta) / effective_num
    w = w / np.sum(w) * no_of_classes
    w = jnp.asarray(w, dtype=jnp.float32)
    y = jax.nn.one_hot(labels, no_of_classes, dtype=jnp.float32)
    alpha = jnp.sum(w[None, :] * y, axis=1, keepdims=True)
    x = logits.astype(jnp.float32)
    bce = jnp.maximum(x, 0.0) - x * y + jnp.log1p(jnp.exp(-jnp.abs(x)))
    mod = jnp.exp(-gamma * y * x - gamma * jnp.logaddexp(0.0, -x))
    return jnp.sum(alpha * mod * bce) / jnp.sum(y)


if __name__ == "__main__":
    key = jax.random.PRNGKey(0)
    beta = 0.999
    gamma = 2.0

    # --- primary small case: single tile ---
    batch, no_of_classes = 8, 16
    samples_per_cls = [int(10 + 7 * i) for i in range(no_of_classes)]
    k1, k2 = jax.random.split(key)
    logits = jax.random.normal(k1, (batch, no_of_classes), dtype=jnp.float32)
    labels = jax.random.randint(k2, (batch,), 0, no_of_classes, dtype=jnp.int32)

    loss = jax.block_until_ready(
        cb_loss(logits, labels, samples_per_cls, no_of_classes, beta, gamma))
    ref = jax.block_until_ready(
        _reference_cb_loss(logits, labels, samples_per_cls, no_of_classes, beta, gamma))
    # gamma==2 path uses the approx EUP reciprocal -> ~1e-4 relative error budget
    assert np.allclose(np.asarray(loss), np.asarray(ref), rtol=2e-3, atol=1e-5), (loss, ref)

    # --- gamma == 0 branch (no modulator, no approx ops) ---
    loss0 = jax.block_until_ready(
        cb_loss(logits, labels, samples_per_cls, no_of_classes, beta, 0.0))
    ref0 = jax.block_until_ready(
        _reference_cb_loss(logits, labels, samples_per_cls, no_of_classes, beta, 0.0))
    assert np.allclose(np.asarray(loss0), np.asarray(ref0), rtol=1e-5, atol=1e-6), (loss0, ref0)

    # --- multi-tile case with a partial (masked) last tile ---
    batch2 = 20
    k3, k4 = jax.random.split(k1)
    logits2 = jax.random.normal(k3, (batch2, no_of_classes), dtype=jnp.float32)
    labels2 = jax.random.randint(k4, (batch2,), 0, no_of_classes, dtype=jnp.int32)
    loss2 = jax.block_until_ready(
        cb_loss(logits2, labels2, samples_per_cls, no_of_classes, beta, gamma,
                block_batch=8))   # grid of 3 tiles, last tile has 4 padded rows
    ref2 = jax.block_until_ready(
        _reference_cb_loss(logits2, labels2, samples_per_cls, no_of_classes, beta, gamma))
    assert np.allclose(np.asarray(loss2), np.asarray(ref2), rtol=2e-3, atol=1e-5), (loss2, ref2)

    print("KERNEL_OK")
</pallas_src>

<mosaic_0001>
module attributes {stable_mosaic.version = 11 : i64} {
  func.func @_cb_loss_kernel(%arg0: i32, %arg1: memref<8x16xf32, #tpu.memory_space<vmem>>, %arg2: memref<8x1xi32, #tpu.memory_space<vmem>>, %arg3: memref<8x1xf32, #tpu.memory_space<vmem>>, %arg4: memref<1x8x128xf32, #tpu.memory_space<vmem>>) attributes {dimension_semantics = [#tpu.dimension_semantics<parallel>], iteration_bounds = array<i64: 1>, scalar_prefetch = 0 : i64, scratch_operands = 0 : i64, tpu.core_type = #tpu.core_type<tc>, window_params = [{transform_indices = @transform_0, window_bounds = array<i64: 8, 16>}, {transform_indices = @transform_1, window_bounds = array<i64: 8, 1>}, {transform_indices = @transform_2, window_bounds = array<i64: 8, 1>}, {transform_indices = @transform_3, window_bounds = array<i64: 1, 8, 128>}]} {
    %c0 = arith.constant 0 : index
    %c0_0 = arith.constant 0 : index
    %0 = vector.load %arg1[%c0, %c0_0] : memref<8x16xf32, #tpu.memory_space<vmem>>, vector<8x16xf32>
    %c0_1 = arith.constant 0 : index
    %c0_2 = arith.constant 0 : index
    %1 = vector.load %arg2[%c0_1, %c0_2] : memref<8x1xi32, #tpu.memory_space<vmem>>, vector<8x1xi32>
    %c0_3 = arith.constant 0 : index
    %c0_4 = arith.constant 0 : index
    %2 = vector.load %arg3[%c0_3, %c0_4] : memref<8x1xf32, #tpu.memory_space<vmem>>, vector<8x1xf32>
    %3 = tpu.iota {dimensions = array<i32: 1>} : vector<8x16xi32>
    %4 = vector.broadcast %1 : vector<8x1xi32> to vector<8x16xi32>
    %5 = arith.cmpi eq, %3, %4 : vector<8x16xi32>
    %cst = arith.constant 0.000000e+00 : f32
    %6 = vector.broadcast %cst : f32 to vector<8x16xf32>
    %7 = arith.maximumf %0, %6 : vector<8x16xf32>
    %8 = math.absf %0 : vector<8x16xf32>
    %cst_5 = arith.constant 0.000000e+00 : f32
    %9 = vector.broadcast %cst_5 : f32 to vector<8x16xf32>
    %10 = arith.subf %9, %8 : vector<8x16xf32>
    %11 = math.exp %10 : vector<8x16xf32>
    %12 = math.log1p %11 : vector<8x16xf32>
    %cst_6 = arith.constant 0.000000e+00 : f32
    %13 = vector.broadcast %cst_6 : f32 to vector<8x16xf32>
    %14 = arith.select %5, %0, %13 : vector<8x16xi1>, vector<8x16xf32>
    %15 = arith.subf %7, %14 : vector<8x16xf32>
    %16 = arith.addf %15, %12 : vector<8x16xf32>
    %cst_7 = arith.constant 1.000000e+00 : f32
    %17 = vector.broadcast %cst_7 : f32 to vector<8x16xf32>
    %18 = arith.addf %17, %11 : vector<8x16xf32>
    %19 = tpu.reciprocal %18 {approx = true} : vector<8x16xf32> -> vector<8x16xf32>
    %cst_8 = arith.constant 0.000000e+00 : f32
    %20 = vector.broadcast %cst_8 : f32 to vector<8x16xf32>
    %21 = arith.cmpf oge, %0, %20 : vector<8x16xf32>
    %22 = arith.xori %5, %21 : vector<8x16xi1>
    %cst_9 = arith.constant dense<true> : vector<8x16xi1>
    %23 = arith.xori %22, %cst_9 : vector<8x16xi1>
    %24 = arith.mulf %11, %19 : vector<8x16xf32>
    %25 = arith.select %23, %24, %19 : vector<8x16xi1>, vector<8x16xf32>
    %26 = arith.mulf %25, %25 : vector<8x16xf32>
    %27 = arith.mulf %26, %16 : vector<8x16xf32>
    %cst_10 = arith.constant dense<0.000000e+00> : vector<8xf32>
    %28 = vector.multi_reduction <add>, %27, %cst_10 [1] : vector<8x16xf32> to vector<8xf32>
    %29 = vector.shape_cast %28 : vector<8xf32> to vector<8x1xf32>
    %30 = arith.mulf %2, %29 : vector<8x1xf32>
    %cst_11 = arith.constant dense<0.000000e+00> : vector<1xf32>
    %31 = vector.multi_reduction <add>, %30, %cst_11 [0] : vector<8x1xf32> to vector<1xf32>
    %32 = vector.shape_cast %31 : vector<1xf32> to vector<1x1xf32>
    %33 = vector.shape_cast %32 : vector<1x1xf32> to vector<1x1x1xf32>
    %34 = vector.shape_cast %33 : vector<1x1x1xf32> to vector<1x1x1xf32>
    %35 = vector.broadcast %34 : vector<1x1x1xf32> to vector<1x8x128xf32>
    %c0_12 = arith.constant 0 : index
    %c0_13 = arith.constant 0 : index
    %c0_14 = arith.constant 0 : index
    %36 = vector.load %arg4[%c0_12, %c0_13, %c0_14] : memref<1x8x128xf32, #tpu.memory_space<vmem>>, vector<1x8x128xf32>
    tpu.vector_store %arg4[%c0_12, %c0_13, %c0_14], %35 {strides = array<i32>} : memref<1x8x128xf32, #tpu.memory_space<vmem>>, vector<1x8x128xf32>,
    return
  }
  func.func @transform_0(%arg0: i32) -> (i32, i32) {
    %c0_i32 = arith.constant 0 : i32
    %c0_i32_0 = arith.constant 0 : i32
    return %arg0, %c0_i32 : i32, i32
  }
  func.func @transform_1(%arg0: i32) -> (i32, i32) {
    %c0_i32 = arith.constant 0 : i32
    %c0_i32_0 = arith.constant 0 : i32
    return %arg0, %c0_i32 : i32, i32
  }
  func.func @transform_2(%arg0: i32) -> (i32, i32) {
    %c0_i32 = arith.constant 0 : i32
    %c0_i32_0 = arith.constant 0 : i32
    return %arg0, %c0_i32 : i32, i32
  }
  func.func @transform_3(%arg0: i32) -> (i32, i32, i32) {
    %c0_i32 = arith.constant 0 : i32
    %c0_i32_0 = arith.constant 0 : i32
    %c0_i32_1 = arith.constant 0 : i32
    return %arg0, %c0_i32, %c0_i32_0 : i32, i32, i32
  }
}

</mosaic_0001>

<llo_original>
// kernel: tpu_custom_call.1
$region0: #{tpu_custom_call.1}
  #allocation0 [shape = 'u32[]', space=smem, size = 0x4, offset = 0x4, fixed_abs, tag = 'smem constant byte address 0x4 - core index']
  #allocation1 [shape = 'u32[144,128]{1,0:T(1,128)}', space=vmem, size = 0x12000, scoped, tag = 'internal scratch']
  %s0 = inlined_call_operand.vmem [shape: f32[8,16], index: 0, kind: input, shape index: {}]
  %s1 = inlined_call_operand.vmem [shape: s32[8,1], index: 1, kind: input, shape index: {}]
  %s2 = inlined_call_operand.vmem [shape: f32[8,1], index: 2, kind: input, shape index: {}]
  %s3 = inlined_call_operand.hbm [shape: f32[1,8,128], index: 3, kind: output, shape index: {}]
  %s4 = sld [smem:[#allocation0]]
  $region22: #{tpu_custom_call.1} parent=0
    _
  %s6 = ssub.s32 1, %s4
  %s7 = scalar_select 0, %s6, %s4
  $region1: #{tpu_custom_call.1} parent=0
    #allocation2 [shape = 'u8[4096]{0}', space=vmem, size = 0x1000, scoped, tag = 'output window, operand 0, single buffered']
    #allocation3 [shape = 's32[1]{0}', space=sflag, size = 0x4, scoped, tag = 'scoped memory for tpu_custom_call.1']
    %8 = vsyncpa [#allocation3], 0
    // Predicated region
    $region2: #{tpu_custom_call.1} parent=1 // pred_check
      _
    $region3: #{tpu_custom_call.1} parent=1 // pred_check_branch
      %10 = sbr.rel (0) target = $region5
    $region4: #{tpu_custom_call.1} parent=1 // pred_region
      _
    $region5: #{tpu_custom_call.1} parent=1 // pred_fallthru
      _
    // Predicated region
    $region6: #{tpu_custom_call.1} parent=1 // pred_check
      _
    $region7: #{tpu_custom_call.1} parent=1 // pred_check_branch
      %12 = sbr.rel (0) target = $region9
    $region8: #{tpu_custom_call.1} parent=1 // pred_region
      _
    $region9: #{tpu_custom_call.1} parent=1 // pred_fallthru
      _
    // Predicated region
    $region10: #{tpu_custom_call.1} parent=1 // pred_check
      _
    $region11: #{tpu_custom_call.1} parent=1 // pred_check_branch
      %14 = sbr.rel (0) target = $region13
    $region12: #{tpu_custom_call.1} parent=1 // pred_region
      _
    $region13: #{tpu_custom_call.1} parent=1 // pred_fallthru
      _
    %v15 = vld [vmem:[%s0] sm:$0xff]
    %v16 = vld [vmem:[%s1] sm:$0xff]
    %v17 = vld [vmem:[%s2] sm:$0xff]
    %v18 = vlaneseq
    %v19 = vand.u32 %v18, 127
    %20 = vset.pattern.permute.xlu0 0
    %21 = vperm.xlu0 %20, %v16
    %v22 = vpop.permute.xlu0 %21
    %vm23 = vcmp.eq.s32.totalorder %v19, %v22
    %v24 = vmax.f32 %v15, 0.0
    %v25 = vand.u32 2147483647, %v15
    %v26 = vsub.f32 0.0, %v25
    %v27 = vmul.f32 %v26, 1.442695
    %v28 = vpow.pop %v27
    %v29 = vadd.f32 %v28, 1.0
    %v30 = vlog2.pop %v29
    %v31 = vmul.f32 %v30, 0.6931472
    %v32 = vmul.f32 -0.5, %v28
    %v33 = vadd.f32 %v32, 1.0
    %v34 = vmul.f32 %v33, %v28
    %v35 = vand.u32 2147483647, %v28
    %vm36 = vcmp.lt.f32.partialorder %v35, 0.0004427343
    %v37 = vsel %vm36, %v34, %v31
    %v38 = vsel %vm23, %v15, 0.0
    %v39 = vsub.f32 %v24, %v38
    %v40 = vadd.f32 %v39, %v37
    %v41 = vadd.f32 %v28, 1.0
    %v42 = vrcp.pop %v41
    %vm43 = vcmp.ge.f32.partialorder %v15, 0.0
    %vm44 = vmxor %vm23, %vm43
    %vm45 = vmxor %vm44, 1
    %v46 = vmul.f32 %v28, %v42
    %v47 = vsel %vm45, %v46, %v42
    %v48 = vmul.f32 %v47, %v47
    %v49 = vmul.f32 %v48, %v40
    %vm50 = vcmask 130048
    %v51 = vsel %vm50, %v49, 0.0
    %52 = vadd.xlane.f32.xlu0 %v51
    %v53 = vpop.xlane.xlu0 %52
    %v54 = vmul.f32 %v17, %v53
    %vm55 = vcmask 7168
    %v56 = vsel %vm55, %v54, 0.0
    %v57 = vrot.slane %v56, 4
    %v58 = vadd.f32 %v56, %v57
    %v59 = vrot.slane %v58, 2
    %v60 = vadd.f32 %v58, %v59
    %v61 = vrot.slane %v60, 1
    %v62 = vadd.f32 %v60, %v61
    %64 = vset.pattern.permute.xlu0 0
    %65 = vperm.xlu0 %64, %v62
    %v66 = vpop.permute.xlu0 %65
    %68 = vst [vmem:[#allocation2] sm:$0xff] %v66
    // Predicated region
    $region14: #{tpu_custom_call.1} parent=1 // pred_check
      _
    $region15: #{tpu_custom_call.1} parent=1 // pred_check_branch
      %70 = sbr.rel (0) target = $region17
    $region16: #{tpu_custom_call.1} parent=1 // pred_region
      %s72 = ssub.s32 128, 128
      %73 = vsyncadd [#allocation3], %s72
      %s75 = sshll.u32 [#allocation2], 4
      %s76 = int_to_ptr.vmem [resolvable:$true] %s75
      %78 = dma.vmem_to_hbm [thread:$0]  %s76, 128, %s3, [#allocation3]
    $region17: #{tpu_custom_call.1} parent=1 // pred_fallthru
      _
    // Predicated region
    $region18: #{tpu_custom_call.1} parent=1 // pred_check
      _
    $region19: #{tpu_custom_call.1} parent=1 // pred_check_branch
      %80 = sbr.rel (0) target = $region21
    $region20: #{tpu_custom_call.1} parent=1 // pred_region
      %81 = dma.done [#allocation3], 128
    $region21: #{tpu_custom_call.1} parent=1 // pred_fallthru
      _
    %82 = vsyncpa [#allocation3], 1

</llo_original>
